<compile_context>
chip_gen: v7x
topology: tpu7x:2x2x1
jax: 0.10.0
libtpu: 0.0.40
codegen_flags: <defaults>
</compile_context>

<pallas_src>
import math
import numpy as np

import jax
import jax.numpy as jnp
from jax.experimental import pallas as pl
from jax.experimental.pallas import tpu as pltpu


# ----------------------------------------------------------------------------
# Hypercomplex algebra (Cayley-Dickson) multiplication table
# ----------------------------------------------------------------------------
def _cd_conj(v):
    return [v[0]] + [-t for t in v[1:]]


def _cd_mul(x, y):
    n = len(x)
    if n == 1:
        return [x[0] * y[0]]
    h = n // 2
    a, b = x[:h], x[h:]
    c, d = y[:h], y[h:]
    first = [p - q for p, q in zip(_cd_mul(a, c), _cd_mul(_cd_conj(d), b))]
    second = [p + q for p, q in zip(_cd_mul(d, a), _cd_mul(b, _cd_conj(c)))]
    return first + second


def hypercomplex_mult_table(n):
    """comp[a][b], sign[a][b] such that e_{comp[a][b]} * e_b = sign[a][b] * e_a."""
    comp = [[0] * n for _ in range(n)]
    sign = [[0] * n for _ in range(n)]
    for c in range(n):
        ec = [0] * n
        ec[c] = 1
        for b in range(n):
            eb = [0] * n
            eb[b] = 1
            prod = _cd_mul(ec, eb)
            a = [i for i, v in enumerate(prod) if v != 0][0]
            comp[a][b] = c
            sign[a][b] = prod[a]
    return comp, sign


def build_hyper_transpose_weight(weights, comp, sign):
    """weights: (n, cin_per, cout_per, kH, kW) -> big W: (n*cin_per, n*cout_per, kH, kW)."""
    n = weights.shape[0]
    rows = []
    for a in range(n):
        cols = [sign[a][b] * weights[comp[a][b]] for b in range(n)]
        rows.append(jnp.concatenate(cols, axis=1))   # out-channel blocks
    return jnp.concatenate(rows, axis=0)             # in-channel blocks


# ----------------------------------------------------------------------------
# Stride-phase tap table
# ----------------------------------------------------------------------------
def _tap_table(kH, kW, s, p, d):
    """Per tap (ky,kx): phase (ry,rx) and input offsets (oy,ox).

    out[oy] gets x[iy]*w[ky] with oy = iy*s - p + ky*d.  Writing oy = qy*s + ry,
    tap ky contributes to phase ry = (ky*d - p) mod s with iy = qy + oy,
    oy = (ry + p - ky*d) // s (exact).
    """
    taps = []
    for ky in range(kH):
        ry = (ky * d - p) % s
        oy = (ry + p - ky * d) // s
        for kx in range(kW):
            rx = (kx * d - p) % s
            ox = (rx + p - kx * d) // s
            taps.append((ky, kx, ry, rx, oy, ox))
    return taps


def _round_up(x, m):
    return ((x + m - 1) // m) * m


def _vmem_capacity_bytes():
    # Generation-dependent tile sizing (v5e/v6e: 128 MiB, v7x: 64 MiB per TC).
    try:
        return int(pltpu.get_tpu_info().vmem_capacity_bytes)
    except Exception:
        return 64 * 1024 * 1024   # conservative (v7x) fallback


def _pick_row_tile(M, K, Npad, budget_bytes, tm_cap=2048):
    """Largest row tile (multiple of 8) whose double-buffered working set fits."""
    kpad = _round_up(K, 128)           # lane padding of the bf16 lhs tile

    def tile_bytes(tm):
        lhs = 2 * tm * kpad * 2        # double-buffered bf16 input
        out = 2 * tm * Npad * 4        # double-buffered f32 output
        rhs = 2 * _round_up(K, 16) * Npad * 2
        bia = 2 * 8 * Npad * 4
        return lhs + out + rhs + bia

    tm = min(_round_up(max(M, 8), 8), tm_cap)
    while tm > 8 and tile_bytes(tm) > budget_bytes:
        tm -= 8
    return max(tm, 8)


# ----------------------------------------------------------------------------
# Pallas kernel: one lane-dense matmul per block (all taps + all phases packed)
# ----------------------------------------------------------------------------
def _matmul_bias_kernel(lhs_ref, rhs_ref, b_ref, o_ref):
    # lhs_ref: (1, TM, K)   bf16   im2col rows
    # rhs_ref: (K, Npad)    bf16   block-diagonal phase-packed weights
    # b_ref  : (1, Npad)    f32    phase-tiled bias
    # o_ref  : (1, TM, Npad) f32
    acc = jnp.dot(lhs_ref[0], rhs_ref[...], preferred_element_type=jnp.float32)
    o_ref[0] = acc + b_ref[...]


def transpose_conv2d_pallas(x_nchw, w_iohw, bias, stride, padding,
                            output_padding, dilation):
    """conv_transpose2d with groups=1 (NCHW in/out, weight (Cin, Cout, kH, kW))."""
    N, Cin, H, W = x_nchw.shape
    Cin_w, Cout, kH, kW = w_iohw.shape
    assert Cin == Cin_w
    s, p, op, d = stride, padding, output_padding, dilation

    Ho = (H - 1) * s - 2 * p + d * (kH - 1) + 1 + op
    Wo = (W - 1) * s - 2 * p + d * (kW - 1) + 1 + op
    assert Ho > 0 and Wo > 0

    Hq = -(-Ho // s)                   # per-phase output rows (computed uniformly)
    Wq = -(-Wo // s)
    taps = _tap_table(kH, kW, s, p, d)
    T = len(taps)
    K = T * Cin                        # packed contraction dim
    Npack = s * s * Cout               # packed output dim (all phases)
    Npad = _round_up(Npack, 128)       # lane-dense output stores

    # Zero border so every tap's shifted window is in bounds (no upsampling).
    offs_y = [t[4] for t in taps]
    offs_x = [t[5] for t in taps]
    pad_t = max(0, -min(offs_y))
    pad_b = max(0, Hq - 1 + max(offs_y) - (H - 1))
    pad_l = max(0, -min(offs_x))
    pad_r = max(0, Wq - 1 + max(offs_x) - (W - 1))

    x_nhwc = jnp.transpose(x_nchw, (0, 2, 3, 1)).astype(jnp.bfloat16)
    x_pad = jnp.pad(x_nhwc, ((0, 0), (pad_t, pad_b), (pad_l, pad_r), (0, 0)))

    # Wrapper-side im2col: concat the T shifted windows along channels (K dim).
    cols = []
    for (ky, kx, ry, rx, oy, ox) in taps:
        y0, x0 = oy + pad_t, ox + pad_l
        cols.append(x_pad[:, y0:y0 + Hq, x0:x0 + Wq, :])
    lhs = jnp.concatenate(cols, axis=-1).reshape(N, Hq * Wq, K)

    # VMEM-budget / generation-aware row tiling.
    M = Hq * Wq
    vmem_cap = _vmem_capacity_bytes()
    vmem_limit = int(vmem_cap * 3 // 4)
    TM = _pick_row_tile(M, K, Npad, budget_bytes=int(vmem_limit * 0.6))
    Mpad = _round_up(max(M, TM), TM)
    if Mpad > M:
        lhs = jnp.pad(lhs, ((0, 0), (0, Mpad - M), (0, 0)))

    # Block-diagonal phase-packed rhs: rows = taps x Cin, cols = phases x Cout.
    wf = jnp.transpose(w_iohw, (2, 3, 0, 1)).astype(jnp.bfloat16)   # (kH,kW,Cin,Cout)
    zero_blk = jnp.zeros((Cin, Cout), jnp.bfloat16)
    rows = []
    for (ky, kx, ry, rx, oy, ox) in taps:
        ph = ry * s + rx
        row = [wf[ky, kx] if q == ph else zero_blk for q in range(s * s)]
        rows.append(jnp.concatenate(row, axis=1))                   # (Cin, Npack)
    rhs = jnp.concatenate(rows, axis=0)                             # (K, Npack)
    if Npad > Npack:
        rhs = jnp.pad(rhs, ((0, 0), (0, Npad - Npack)))

    bias_p = jnp.tile(bias.astype(jnp.float32), s * s)              # (Npack,)
    if Npad > Npack:
        bias_p = jnp.pad(bias_p, (0, Npad - Npack))
    bias_p = bias_p.reshape(1, Npad)

    grid = (N, Mpad // TM)
    flops = 2 * N * Mpad * K * Npad
    bytes_accessed = (N * Mpad * K * 2 + K * Npad * 2 + Npad * 4 +
                      N * Mpad * Npad * 4)

    out_packed = pl.pallas_call(
        _matmul_bias_kernel,
        out_shape=jax.ShapeDtypeStruct((N, Mpad, Npad), jnp.float32),
        grid_spec=pltpu.PrefetchScalarGridSpec(
            num_scalar_prefetch=0,
            grid=grid,
            in_specs=[
                pl.BlockSpec((1, TM, K), lambda n, m: (n, m, 0)),
                pl.BlockSpec((K, Npad), lambda n, m: (0, 0)),
                pl.BlockSpec((1, Npad), lambda n, m: (0, 0)),
            ],
            out_specs=pl.BlockSpec((1, TM, Npad), lambda n, m: (n, m, 0)),
        ),
        compiler_params=pltpu.CompilerParams(
            dimension_semantics=("parallel", "parallel"),
            vmem_limit_bytes=vmem_limit),
        cost_estimate=pl.CostEstimate(flops=flops, transcendentals=0,
                                      bytes_accessed=bytes_accessed),
    )(lhs, rhs, bias_p)

    # De-interleave phases (cheap XLA layout plumbing) and crop.
    out = out_packed[:, :M, :Npack].reshape(N, Hq, Wq, s, s, Cout)  # (n,qy,qx,ry,rx,c)
    out = jnp.transpose(out, (0, 1, 3, 2, 4, 5))                    # (n,qy,ry,qx,rx,c)
    out = out.reshape(N, Hq * s, Wq * s, Cout)[:, :Ho, :Wo, :]
    return jnp.transpose(out, (0, 3, 1, 2))                         # NCHW


def hypercomplex_transpose_conv(x, weights, bias, stride, padding,
                                output_padding, groups, dilation, comp, sign):
    # TODO(synk): grouped (groups != 1) hypercomplex transpose conv not implemented.
    assert groups == 1
    big_w = build_hyper_transpose_weight(weights, comp, sign)
    return transpose_conv2d_pallas(x, big_w, bias, stride, padding,
                                   output_padding, dilation)


# ----------------------------------------------------------------------------
# Naive numpy reference for conv_transpose2d (independent check)
# ----------------------------------------------------------------------------
def ref_conv_transpose_nchw(x, w, b, stride, padding, output_padding, dilation):
    N, Cin, H, W = x.shape
    _, Cout, kH, kW = w.shape
    Ho = (H - 1) * stride - 2 * padding + dilation * (kH - 1) + 1 + output_padding
    Wo = (W - 1) * stride - 2 * padding + dilation * (kW - 1) + 1 + output_padding
    out = np.zeros((N, Cout, Ho, Wo), np.float64)
    for ky in range(kH):
        for kx in range(kW):
            contrib = np.einsum('nihw,io->nohw', x, w[:, :, ky, kx])
            ys = np.arange(H) * stride - padding + ky * dilation
            xs = np.arange(W) * stride - padding + kx * dilation
            vy = (ys >= 0) & (ys < Ho)
            vx = (xs >= 0) & (xs < Wo)
            out[:, :, ys[vy][:, None], xs[vx][None, :]] += \
                contrib[:, :, vy, :][:, :, :, vx]
    out += b[None, :, None, None]
    return out.astype(np.float32)


# ----------------------------------------------------------------------------
if __name__ == "__main__":
    # Module config (small, consistent with HyperTransposeConv.__init__).
    # NOTE: perf conclusions should be re-checked at production shapes; this
    # size only validates correctness.
    num_components = 8                     # octonion
    in_channels, out_channels = 16, 16     # per-component: 2 -> 2
    kernel_size, stride = 3, 2
    padding, output_padding, dilation, groups = 1, 1, 1, 1
    N, H, W = 2, 8, 8

    cin_per = in_channels // num_components
    cout_per = out_channels // num_components

    key = jax.random.PRNGKey(0)
    kx_key, kw_key, kb_key = jax.random.split(key, 3)

    # Deterministic parameter init (shapes from __init__: num_components weights
    # of w_shape=(in_per, out_per, k, k)).
    fan = cin_per * kernel_size * kernel_size * num_components
    weights = jax.random.normal(
        kw_key, (num_components, cin_per, cout_per, kernel_size, kernel_size),
        jnp.float32) * (1.0 / math.sqrt(fan))
    bias = jax.random.normal(kb_key, (out_channels,), jnp.float32) * 0.1

    x = jax.random.normal(kx_key, (N, in_channels, H, W), jnp.float32)

    comp, sign = hypercomplex_mult_table(num_components)

    out = hypercomplex_transpose_conv(x, weights, bias, stride, padding,
                                      output_padding, groups, dilation,
                                      comp, sign)
    out = jax.block_until_ready(out)

    # Independent correctness check vs naive numpy transposed conv, run on the
    # SAME bf16-rounded operands the kernel feeds the MXU (so only f32-vs-f64
    # accumulation-order differences remain).
    big_w = build_hyper_transpose_weight(weights, comp, sign)
    x_bf = np.asarray(x.astype(jnp.bfloat16).astype(jnp.float32))
    w_bf = np.asarray(big_w.astype(jnp.bfloat16).astype(jnp.float32))
    ref = ref_conv_transpose_nchw(x_bf, w_bf, np.asarray(bias, np.float32),
                                  stride, padding, output_padding, dilation)
    assert out.shape == ref.shape, (out.shape, ref.shape)
    np.testing.assert_allclose(np.asarray(out), ref, rtol=1e-3, atol=1e-3)

    print("KERNEL_OK")
</pallas_src>

<mosaic_0001>
module attributes {stable_mosaic.version = 11 : i64} {
  func.func @_matmul_bias_kernel(%arg0: i32, %arg1: i32, %arg2: memref<1x64x144xbf16, #tpu.memory_space<vmem>>, %arg3: memref<144x128xbf16, #tpu.memory_space<vmem>>, %arg4: memref<1x128xf32, #tpu.memory_space<vmem>>, %arg5: memref<1x64x128xf32, #tpu.memory_space<vmem>>) attributes {dimension_semantics = [#tpu.dimension_semantics<parallel>, #tpu.dimension_semantics<parallel>], iteration_bounds = array<i64: 2, 1>, scalar_prefetch = 0 : i64, scratch_operands = 0 : i64, tpu.core_type = #tpu.core_type<tc>, window_params = [{transform_indices = @transform_0, window_bounds = array<i64: 1, 64, 144>}, {pipeline_mode = #tpu.pipeline_mode<synchronous>, transform_indices = @transform_1, window_bounds = array<i64: 144, 128>}, {pipeline_mode = #tpu.pipeline_mode<synchronous>, transform_indices = @transform_2, window_bounds = array<i64: 1, 128>}, {transform_indices = @transform_3, window_bounds = array<i64: 1, 64, 128>}]} {
    %c0 = arith.constant 0 : index
    %c0_0 = arith.constant 0 : index
    %c0_1 = arith.constant 0 : index
    %0 = vector.load %arg2[%c0, %c0_0, %c0_1] : memref<1x64x144xbf16, #tpu.memory_space<vmem>>, vector<1x64x144xbf16>
    %1 = vector.shape_cast %0 : vector<1x64x144xbf16> to vector<64x144xbf16>
    %c0_2 = arith.constant 0 : index
    %c0_3 = arith.constant 0 : index
    %2 = vector.load %arg3[%c0_2, %c0_3] : memref<144x128xbf16, #tpu.memory_space<vmem>>, vector<144x128xbf16>
    %cst = arith.constant dense<0.000000e+00> : vector<64x128xf32>
    %3 = tpu.matmul %1, %2, %cst {dimension_numbers = #tpu.dot_dimension_numbers<[1], [0], [0], [1], [0, 0, 1, 1], [], []>} : vector<64x144xbf16>, vector<144x128xbf16>, vector<64x128xf32> -> vector<64x128xf32>
    %c0_4 = arith.constant 0 : index
    %c0_5 = arith.constant 0 : index
    %4 = vector.load %arg4[%c0_4, %c0_5] : memref<1x128xf32, #tpu.memory_space<vmem>>, vector<1x128xf32>
    %5 = vector.broadcast %4 : vector<1x128xf32> to vector<64x128xf32>
    %6 = arith.addf %3, %5 : vector<64x128xf32>
    %c0_6 = arith.constant 0 : index
    %c0_7 = arith.constant 0 : index
    %c0_8 = arith.constant 0 : index
    %7 = vector.load %arg5[%c0_6, %c0_7, %c0_8] : memref<1x64x128xf32, #tpu.memory_space<vmem>>, vector<1x64x128xf32>
    %8 = vector.shape_cast %7 : vector<1x64x128xf32> to vector<64x128xf32>
    %9 = vector.shape_cast %6 : vector<64x128xf32> to vector<1x64x128xf32>
    tpu.vector_store %arg5[%c0_6, %c0_7, %c0_8], %9 {strides = array<i32>} : memref<1x64x128xf32, #tpu.memory_space<vmem>>, vector<1x64x128xf32>,
    return
  }
  func.func @transform_0(%arg0: i32, %arg1: i32) -> (i32, i32, i32) {
    %c0_i32 = arith.constant 0 : i32
    %c0_i32_0 = arith.constant 0 : i32
    return %arg0, %arg1, %c0_i32 : i32, i32, i32
  }
  func.func @transform_1(%arg0: i32, %arg1: i32) -> (i32, i32) {
    %c0_i32 = arith.constant 0 : i32
    %c0_i32_0 = arith.constant 0 : i32
    %c0_i32_1 = arith.constant 0 : i32
    return %c0_i32, %c0_i32_0 : i32, i32
  }
  func.func @transform_2(%arg0: i32, %arg1: i32) -> (i32, i32) {
    %c0_i32 = arith.constant 0 : i32
    %c0_i32_0 = arith.constant 0 : i32
    %c0_i32_1 = arith.constant 0 : i32
    return %c0_i32, %c0_i32_0 : i32, i32
  }
  func.func @transform_3(%arg0: i32, %arg1: i32) -> (i32, i32, i32) {
    %c0_i32 = arith.constant 0 : i32
    %c0_i32_0 = arith.constant 0 : i32
    return %arg0, %arg1, %c0_i32 : i32, i32, i32
  }
}

</mosaic_0001>

<llo_original>
// kernel: tpu_custom_call.1
$region0: #{tpu_custom_call.1}
  #allocation0 [shape = 'u32[]', space=smem, size = 0x4, offset = 0x4, fixed_abs, tag = 'smem constant byte address 0x4 - core index']
  #allocation1 [shape = 'u32[144,128]{1,0:T(1,128)}', space=vmem, size = 0x12000, scoped, tag = 'internal scratch']
  %s0 = inlined_call_operand.hbm [shape: bf16[2,64,144], index: 0, kind: input, shape index: {}]
  %s1 = inlined_call_operand.hbm [shape: bf16[144,128], index: 1, kind: input, shape index: {}]
  %s2 = inlined_call_operand.vmem [shape: f32[1,128], index: 2, kind: input, shape index: {}]
  %s3 = inlined_call_operand.hbm [shape: f32[2,64,128], index: 3, kind: output, shape index: {}]
  %s4 = sld [smem:[#allocation0]]
  $region53: #{tpu_custom_call.1} parent=0
    _
  %s6 = ssub.s32 1, %s4
  %s7 = scalar_select 0, %s6, %s4
  $region1: #{tpu_custom_call.1} parent=0
    #allocation2 [shape = 'u8[65536]{0}', space=vmem, size = 0x10000, scoped, tag = 'input window, operand 0']
    #allocation3 [shape = 's32[2]{0}', space=sflag, size = 0x8, scoped, tag = 'scoped memory for tpu_custom_call.1']
    #allocation4 [shape = 's32[2]{0}', space=sflag, size = 0x8, scoped, tag = 'scoped memory for tpu_custom_call.1']
    #allocation5 [shape = 'u8[36864]{0}', space=vmem, size = 0x9000, scoped, tag = 'input window, operand 1, single buffered']
    #allocation6 [shape = 's32[1]{0}', space=sflag, size = 0x4, scoped, tag = 'scoped memory for tpu_custom_call.1']
    #allocation7 [shape = 'u8[65536]{0}', space=vmem, size = 0x10000, scoped, tag = 'output window, operand 0']
    %8 = vsyncpa [#allocation3], 0
    %s9 = scalar_lea.sflag [#allocation3], 1
    %10 = vsyncpa %s9, 0
    %11 = vsyncpa [#allocation6], 0
    %12 = vsyncpa [#allocation4], 0
    %s13 = scalar_lea.sflag [#allocation4], 1
    %14 = vsyncpa %s13, 0
    loop: start=0, step=1, limit=4
    $region2: #{tpu_custom_call.1} parent=1 // loop_pre_header
      _
    $region3: #{tpu_custom_call.1} parent=1 // loop_header
      %s16 = sphi 0, %s20
      %p17 = scmp.ge.s32.totalorder %s16, 4
      %s23 = sphi 0, %s35
      %s24 = sphi 0, %s31
      %s25 = sphi 0, %s23
      %s26 = sphi 0, %s24
      %s27 = sphi 0, %s25
      %s28 = sphi 0, %s26
      %s40 = sphi 0, %s42
      %s43 = sphi 0, %s40
      %s44 = sphi 0, %s43
      %s60 = sphi 0, %s44
      %s64 = sphi 0, %s64
      %s66 = sphi 0, %s64
      %s67 = sphi 0, %s66
      %s81 = sphi 0, %s67
      %s85 = sphi 0, %s85
      %s87 = sphi 0, %s85
      %s88 = sphi 0, %s87
      %s102 = sphi 0, %s88
      %s110 = sphi 0, %s112
      %s113 = sphi 0, %s110
      %s114 = sphi 0, %s113
      %s130 = sphi 0, %s114
    $region4: #{tpu_custom_call.1} parent=1 // loop_header_branch
      %19 = sbr.rel (%p17) target = $region8
    $region5: #{tpu_custom_call.1} parent=1 // loop_body
      %s21 = ssub.s32 %s16, 1
      %s22 = ssub.s32 %s16, 2
      %s29 = sadd.s32 1, %s24
      %p30 = scmp.ge.s32.totalorder %s29, 1
      %s31 = scalar_select %p30, 0, %s29
      %s32 = sadd.s32 1, %s23
      %s33 = scalar_select %p30, %s32, %s23
      %p34 = scmp.ge.s32.totalorder %s33, 2
      %s35 = scalar_select %p34, 0, %s33
      %s36 = ssub.s32 %s23, %s35
      %s37 = ssub.s32 %s24, %s31
      %s38 = sor.u32 %s36, %s37
      %p39 = scmp.eq.s32.totalorder %s38, 0
      %s41 = sadd.s32 %s40, 1
      %s42 = scalar_select %p39, %s40, %s41
      %p45 = pneg %p39
      %p46 = scmp.eq.s32.totalorder %s16, 1
      %p47 = por %p45, %p46
      %p48 = scmp.ne.s32.totalorder %s40, %s43
      %p49 = scmp.eq.s32.totalorder %s16, 0
      %p50 = por %p48, %p49
      %p51 = scmp.ne.s32.totalorder %s40, %s43
      %p52 = scmp.eq.s32.totalorder %s21, 1
      %p53 = por %p51, %p52
      %p54 = scmp.ne.s32.totalorder %s43, %s44
      %p55 = scmp.eq.s32.totalorder %s21, 0
      %p56 = por %p54, %p55
      %p57 = scmp.ne.s32.totalorder %s43, %s44
      %p58 = scmp.eq.s32.totalorder %s22, 1
      %p59 = por %p57, %p58
      %p61 = scmp.ne.s32.totalorder %s44, %s60
      %p62 = scmp.eq.s32.totalorder %s22, 0
      %p63 = por %p61, %p62
      %s65 = sadd.s32 %s64, 1
      %p68 = scmp.eq.s32.totalorder %s16, 1
      %p69 = scmp.ne.s32.totalorder %s64, %s66
      %p70 = scmp.eq.s32.totalorder %s16, 0
      %p71 = por %p69, %p70
      %p72 = scmp.ne.s32.totalorder %s64, %s66
      %p73 = scmp.eq.s32.totalorder %s21, 1
      %p74 = por %p72, %p73
      %p75 = scmp.ne.s32.totalorder %s66, %s67
      %p76 = scmp.eq.s32.totalorder %s21, 0
      %p77 = por %p75, %p76
      %p78 = scmp.ne.s32.totalorder %s66, %s67
      %p79 = scmp.eq.s32.totalorder %s22, 1
      %p80 = por %p78, %p79
      %p82 = scmp.ne.s32.totalorder %s67, %s81
      %p83 = scmp.eq.s32.totalorder %s22, 0
      %p84 = por %p82, %p83
      %s86 = sadd.s32 %s85, 1
      %p89 = scmp.eq.s32.totalorder %s16, 1
      %p90 = scmp.ne.s32.totalorder %s85, %s87
      %p91 = scmp.eq.s32.totalorder %s16, 0
      %p92 = por %p90, %p91
      %p93 = scmp.ne.s32.totalorder %s85, %s87
      %p94 = scmp.eq.s32.totalorder %s21, 1
      %p95 = por %p93, %p94
      %p96 = scmp.ne.s32.totalorder %s87, %s88
      %p97 = scmp.eq.s32.totalorder %s21, 0
      %p98 = por %p96, %p97
      %p99 = scmp.ne.s32.totalorder %s87, %s88
      %p100 = scmp.eq.s32.totalorder %s22, 1
      %p101 = por %p99, %p100
      %p103 = scmp.ne.s32.totalorder %s88, %s102
      %p104 = scmp.eq.s32.totalorder %s22, 0
      %p105 = por %p103, %p104
      %s106 = ssub.s32 %s23, %s35
      %s107 = ssub.s32 %s24, %s31
      %s108 = sor.u32 %s106, %s107
      %p109 = scmp.eq.s32.totalorder %s108, 0
      %s111 = sadd.s32 %s110, 1
      %s112 = scalar_select %p109, %s110, %s111
      %p115 = pneg %p109
      %p116 = scmp.eq.s32.totalorder %s16, 1
      %p117 = por %p115, %p116
      %p118 = scmp.ne.s32.totalorder %s110, %s113
      %p119 = scmp.eq.s32.totalorder %s16, 0
      %p120 = por %p118, %p119
      %p121 = scmp.ne.s32.totalorder %s110, %s113
      %p122 = scmp.eq.s32.totalorder %s21, 1
      %p123 = por %p121, %p122
      %p124 = scmp.ne.s32.totalorder %s113, %s114
      %p125 = scmp.eq.s32.totalorder %s21, 0
      %p126 = por %p124, %p125
      %p127 = scmp.ne.s32.totalorder %s113, %s114
      %p128 = scmp.eq.s32.totalorder %s22, 1
      %p129 = por %p127, %p128
      %p131 = scmp.ne.s32.totalorder %s114, %s130
      %p132 = scmp.eq.s32.totalorder %s22, 0
      %p133 = por %p131, %p132
      %p134 = scmp.le.s32.totalorder 1, %s16
      %p135 = scmp.lt.s32.totalorder %s16, 3
      %p136 = pnand %p134, %p135
      %p137 = pneg %p136
      // Predicated region
      $region9: #{tpu_custom_call.1} parent=5 // pred_check
        _
      $region10: #{tpu_custom_call.1} parent=5 // pred_check_branch
        %139 = sbr.rel (%p136) target = $region12
      $region11: #{tpu_custom_call.1} parent=5 // pred_region
        %s140 = ssub.s32 %s16, 1
        // Predicated region
        $region13: #{tpu_custom_call.1} parent=11 // pred_check
          %p141 = pneg %p77
        $region14: #{tpu_custom_call.1} parent=11 // pred_check_branch
          %143 = sbr.rel (%p141) target = $region16
        $region15: #{tpu_custom_call.1} parent=11 // pred_region
          %s145 = ssub.s32 1152, 1152
          %146 = vsyncadd [#allocation6], %s145
          %s147 = sshll.u32 [#allocation5], 4
          %s148 = int_to_ptr.vmem [resolvable:$true] %s147
          %153 = dma.hbm_to_vmem [thread:$0]  %s1, 1152, %s148, [#allocation6], 64, 64, 4
        $region16: #{tpu_custom_call.1} parent=11 // pred_fallthru
          _
        // Predicated region
        $region17: #{tpu_custom_call.1} parent=11 // pred_check
          %p154 = pneg %p98
        $region18: #{tpu_custom_call.1} parent=11 // pred_check_branch
          %156 = sbr.rel (%p154) target = $region20
        $region19: #{tpu_custom_call.1} parent=11 // pred_region
          _
        $region20: #{tpu_custom_call.1} parent=11 // pred_fallthru
          _
      $region12: #{tpu_custom_call.1} parent=5 // pred_fallthru
        _
      %p157 = scmp.lt.s32.totalorder %s16, 2
      // Predicated region
      $region21: #{tpu_custom_call.1} parent=5 // pred_check
        %p158 = pneg %p157
      $region22: #{tpu_custom_call.1} parent=5 // pred_check_branch
        %160 = sbr.rel (%p158) target = $region24
      $region23: #{tpu_custom_call.1} parent=5 // pred_region
        // Predicated region
        $region25: #{tpu_custom_call.1} parent=23 // pred_check
          %p161 = pneg %p50
        $region26: #{tpu_custom_call.1} parent=23 // pred_check_branch
          %163 = sbr.rel (%p161) target = $region28
        $region27: #{tpu_custom_call.1} parent=23 // pred_region
          %s164 = sand.u32 %s40, 1
          %s165 = scalar_lea.sflag [#allocation3], %s164
          %s166 = sand.u32 %s40, 1
          %s167 = smul.addr %s166, 64
          %s168 = scalar_lea.vmem [#allocation2], %s167
          %s169 = smul.u32 8, %s24
          %s171 = ssub.s32 1024, 1024
          %172 = vsyncadd %s165, %s171
          %s173 = smul.addr %s169, 2
          %s174 = smul.addr %s23, 16
          %s175 = sadd.s32 %s173, %s174
          %s176 = smul.addr %s175, 64
          %s177 = scalar_lea.hbm %s0, %s176
          %s178 = sshll.u32 %s168, 4
          %s179 = int_to_ptr.vmem [resolvable:$true] %s178
          %184 = dma.hbm_to_vmem [thread:$0]  %s177, 1024, %s179, %s165, 128, 128, 8
        $region28: #{tpu_custom_call.1} parent=23 // pred_fallthru
          _
      $region24: #{tpu_custom_call.1} parent=5 // pred_fallthru
        _
      %p185 = scmp.le.s32.totalorder 1, %s16
      %p186 = scmp.lt.s32.totalorder %s16, 3
      %p187 = pnand %p185, %p186
      %p188 = pneg %p187
      // Predicated region
      $region29: #{tpu_custom_call.1} parent=5 // pred_check
        _
      $region30: #{tpu_custom_call.1} parent=5 // pred_check_branch
        %190 = sbr.rel (%p187) target = $region32
      $region31: #{tpu_custom_call.1} parent=5 // pred_region
        %s191 = ssub.s32 %s16, 1
        %s192 = sand.u32 %s43, 1
        %s193 = scalar_lea.sflag [#allocation3], %s192
        %s194 = sand.u32 %s43, 1
        %s195 = smul.addr %s194, 64
        %s196 = scalar_lea.vmem [#allocation2], %s195
        // Predicated region
        $region33: #{tpu_custom_call.1} parent=31 // pred_check
          %p197 = pneg %p56
        $region34: #{tpu_custom_call.1} parent=31 // pred_check_branch
          %199 = sbr.rel (%p197) target = $region36
        $region35: #{tpu_custom_call.1} parent=31 // pred_region
          %200 = dma.done %s193, 1024
        $region36: #{tpu_custom_call.1} parent=31 // pred_fallthru
          _
        // Predicated region
        $region37: #{tpu_custom_call.1} parent=31 // pred_check
          %p201 = pneg %p77
        $region38: #{tpu_custom_call.1} parent=31 // pred_check_branch
          %203 = sbr.rel (%p201) target = $region40
        $region39: #{tpu_custom_call.1} parent=31 // pred_region
          %204 = dma.done [#allocation6], 1152
        $region40: #{tpu_custom_call.1} parent=31 // pred_fallthru
          _
        %s205 = sand.u32 %s43, 1
        %s206 = scalar_lea.sflag [#allocation3], %s205
        %s207 = sand.u32 %s43, 1
        %s208 = smul.addr %s207, 64
        %s209 = scalar_lea.vmem [#allocation2], %s208
        %p210 = pneg %p56
        %p211 = pneg %p53
        %p212 = pneg %p77
        %p213 = pneg %p74
        %p214 = pneg %p98
        %p215 = pneg %p95
        %p216 = pneg %p126
        %p217 = pneg %p123
        %s218 = sand.u32 %s113, 1
        %s219 = scalar_lea.sflag [#allocation4], %s218
        %s220 = sand.u32 %s113, 1
        %s221 = smul.addr %s220, 64
        %s222 = scalar_lea.vmem [#allocation7], %s221
        %s223 = smul.u32 8, %s26
        %s224 = smul.u32 8, %s26
        %v226 = vld [vmem:[%s196] sm:$0xff]
        %v227 = vld [vmem:[%s196 + $0x8] sm:$0xff]
        %v228 = vld [vmem:[%s196 + $0x10] sm:$0xff]
        %v229 = vld [vmem:[%s196 + $0x18] sm:$0xff]
        %v230 = vld [vmem:[%s196 + $0x20] sm:$0xff]
        %v231 = vld [vmem:[%s196 + $0x28] sm:$0xff]
        %v232 = vld [vmem:[%s196 + $0x30] sm:$0xff]
        %v233 = vld [vmem:[%s196 + $0x38] sm:$0xff]
        %v234 = vld [vmem:[#allocation5] sm:$0xf]
        %v235 = vld [vmem:[#allocation5 + $0x4] sm:$0xf]
        %v236 = vld [vmem:[#allocation5 + $0x8] sm:$0xf]
        %v237 = vld [vmem:[#allocation5 + $0xc] sm:$0xf]
        %v238 = vld [vmem:[#allocation5 + $0x10] sm:$0xf]
        %v239 = vld [vmem:[#allocation5 + $0x14] sm:$0xf]
        %v240 = vld [vmem:[#allocation5 + $0x18] sm:$0xf]
        %v241 = vld [vmem:[#allocation5 + $0x1c] sm:$0xf]
        %v242 = vld [vmem:[#allocation5 + $0x20] sm:$0xf]
        %v243 = vld [vmem:[#allocation5 + $0x24] sm:$0xf]
        %v244 = vld [vmem:[#allocation5 + $0x28] sm:$0xf]
        %v245 = vld [vmem:[#allocation5 + $0x2c] sm:$0xf]
        %v246 = vld [vmem:[#allocation5 + $0x30] sm:$0xf]
        %v247 = vld [vmem:[#allocation5 + $0x34] sm:$0xf]
        %v248 = vld [vmem:[#allocation5 + $0x38] sm:$0xf]
        %v249 = vld [vmem:[#allocation5 + $0x3c] sm:$0xf]
        %v250 = vld [vmem:[#allocation5 + $0x40] sm:$0xf]
        %v251 = vld [vmem:[#allocation5 + $0x44] sm:$0xf]
        %v252 = vld [vmem:[%s2] sm:$0x1]
        %v254 = vlaneseq
        %v255 = vshrl.u32 %v254, 7
        %v256 = vsub.s32 0, %v255
        %v257 = vrot.slane %v252, %v256
        %v267 = vunpack.c.l.b16 %v226
        %v268 = vunpack.c.h.b16 %v226
        %v269 = vunpack.c.l.b16 %v227
        %v270 = vunpack.c.h.b16 %v227
        %v271 = vunpack.c.l.b16 %v228
        %v272 = vunpack.c.h.b16 %v228
        %v273 = vunpack.c.l.b16 %v229
        %v274 = vunpack.c.h.b16 %v229
        %v275 = vunpack.c.l.b16 %v230
        %v276 = vunpack.c.h.b16 %v230
        %v277 = vunpack.c.l.b16 %v231
        %v278 = vunpack.c.h.b16 %v231
        %v279 = vunpack.c.l.b16 %v232
        %v280 = vunpack.c.h.b16 %v232
        %v281 = vunpack.c.l.b16 %v233
        %v282 = vunpack.c.h.b16 %v233
        %v283 = vpack.c.b16 %v269, %v267
        %v284 = vpack.c.b16 %v270, %v268
        %v285 = vpack.c.b16 %v273, %v271
        %v286 = vpack.c.b16 %v274, %v272
        %v287 = vpack.c.b16 %v277, %v275
        %v288 = vpack.c.b16 %v278, %v276
        %v289 = vpack.c.b16 %v281, %v279
        %v290 = vpack.c.b16 %v282, %v280
        %v313 = vunpack.c.l.b16 %v234
        %v314 = vunpack.c.l.b16 %v235
        %v315 = vunpack.c.l.b16 %v236
        %v316 = vunpack.c.l.b16 %v237
        %v317 = vunpack.c.l.b16 %v238
        %v318 = vunpack.c.l.b16 %v239
        %v319 = vunpack.c.l.b16 %v240
        %v320 = vunpack.c.l.b16 %v241
        %v321 = vunpack.c.l.b16 %v242
        %v322 = vunpack.c.l.b16 %v243
        %v323 = vunpack.c.l.b16 %v244
        %v324 = vunpack.c.l.b16 %v245
        %v325 = vunpack.c.l.b16 %v246
        %v326 = vunpack.c.l.b16 %v247
        %v327 = vunpack.c.l.b16 %v248
        %v328 = vunpack.c.l.b16 %v249
        %v329 = vunpack.c.l.b16 %v250
        %v330 = vunpack.c.l.b16 %v251
        %v331 = vpack.c.b16 %v314, %v313
        %v332 = vpack.c.b16 %v316, %v315
        %v333 = vpack.c.b16 %v318, %v317
        %v334 = vpack.c.b16 %v320, %v319
        %v335 = vpack.c.b16 %v322, %v321
        %v336 = vpack.c.b16 %v324, %v323
        %v337 = vpack.c.b16 %v326, %v325
        %v338 = vpack.c.b16 %v328, %v327
        %v339 = vpack.c.b16 %v330, %v329
        %vm349 = vcmask 130048
        %v351 = vsel %vm349, %v284, 0
        %v354 = vsel %vm349, %v286, 0
        %v357 = vsel %vm349, %v288, 0
        %v360 = vsel %vm349, %v290, 0
        %362 = vmatprep.subr.bf16.mxu0 0
        %363 = vmatpush1.bf16.msra.mxu0 %v331
        %364 = vmatprep.subr.bf16.mxu0 0
        %365 = vmatpush1.bf16.msra.mxu0 %v332
        %366 = vmatprep.subr.bf16.mxu0 0
        %367 = vmatpush1.bf16.msra.mxu0 %v333
        %368 = vmatprep.subr.bf16.mxu0 0
        %369 = vmatpush1.bf16.msra.mxu0 %v334
        %370 = vmatprep.subr.bf16.mxu0 0
        %371 = vmatpush1.bf16.msra.mxu0 %v335
        %372 = vmatprep.subr.bf16.mxu0 0
        %373 = vmatpush1.bf16.msra.mxu0 %v336
        %374 = vmatprep.subr.bf16.mxu0 0
        %375 = vmatpush1.bf16.msra.mxu0 %v337
        %376 = vmatprep.subr.bf16.mxu0 0
        %377 = vmatpush1.bf16.msra.mxu0 %v338
        %378 = vmatprep.subr.bf16.mxu0 0
        %379 = vmatpush1.bf16.msra.mxu0 %v339
        %380 = vmatprep.subr.bf16.mxu0 0
        %381 = vmatpush1.bf16.msra.mxu0 0
        %382 = vmatprep.subr.bf16.mxu0 0
        %383 = vmatpush1.bf16.msra.mxu0 0
        %384 = vmatprep.subr.bf16.mxu0 0
        %385 = vmatpush1.bf16.msra.mxu0 0
        %386 = vmatprep.subr.bf16.mxu0 0
        %387 = vmatpush1.bf16.msra.mxu0 0
        %388 = vmatprep.subr.bf16.mxu0 0
        %389 = vmatpush1.bf16.msra.mxu0 0
        %390 = vmatprep.subr.bf16.mxu0 0
        %391 = vmatpush1.bf16.msra.mxu0 0
        %392 = vmatprep.subr.bf16.mxu0 0
        %393 = vmatpush1.bf16.msra.mxu0 0
        %394 = vmatprep.mubr.bf16.mxu0 %v351
        %395 = vmatmul.mubr.bf16.gmra.mrb[0].mxu0 %v283
        %v396 = vpop.f32.mrb[0].mxu0
        %v397 = vadd.f32 %v257, %v396
        %v398 = vpop.f32.mrb[0].mxu0
        %v399 = vpop.f32.mrb[0].mxu0
        %v400 = vadd.f32 %v257, %v399
        %v401 = vpop.f32.mrb[0].mxu0
        %402 = vmatprep.mubr.bf16.mxu0 %v354
        %403 = vmatmul.mubr.bf16.gmra.mrb[0].mxu0 %v285
        %v404 = vpop.f32.mrb[0].mxu0
        %v405 = vadd.f32 %v257, %v404
        %v406 = vpop.f32.mrb[0].mxu0
        %v407 = vpop.f32.mrb[0].mxu0
        %v408 = vadd.f32 %v257, %v407
        %v409 = vpop.f32.mrb[0].mxu0
        %410 = vmatprep.mubr.bf16.mxu0 %v357
        %411 = vmatmul.mubr.bf16.gmra.mrb[0].mxu0 %v287
        %v412 = vpop.f32.mrb[0].mxu0
        %v413 = vadd.f32 %v257, %v412
        %v414 = vpop.f32.mrb[0].mxu0
        %v415 = vpop.f32.mrb[0].mxu0
        %v416 = vadd.f32 %v257, %v415
        %v417 = vpop.f32.mrb[0].mxu0
        %418 = vmatprep.mubr.bf16.mxu0 %v360
        %419 = vmatmul.mubr.bf16.gmra.mrb[0].mxu0 %v289
        %v420 = vpop.f32.mrb[0].mxu0
        %v421 = vadd.f32 %v257, %v420
        %v422 = vpop.f32.mrb[0].mxu0
        %v423 = vpop.f32.mrb[0].mxu0
        %v424 = vadd.f32 %v257, %v423
        %v425 = vpop.f32.mrb[0].mxu0
        %426 = vdwg.mxu0
        %427 = vst [vmem:[%s222] sm:$0xff] %v397
        %428 = vst [vmem:[%s222 + $0x8] sm:$0xff] %v400
        %429 = vst [vmem:[%s222 + $0x10] sm:$0xff] %v405
        %430 = vst [vmem:[%s222 + $0x18] sm:$0xff] %v408
        %431 = vst [vmem:[%s222 + $0x20] sm:$0xff] %v413
        %432 = vst [vmem:[%s222 + $0x28] sm:$0xff] %v416
        %433 = vst [vmem:[%s222 + $0x30] sm:$0xff] %v421
        %434 = vst [vmem:[%s222 + $0x38] sm:$0xff] %v424
        %s435 = sand.u32 %s113, 1
        %s436 = scalar_lea.sflag [#allocation4], %s435
        %s437 = sand.u32 %s113, 1
        %s438 = smul.addr %s437, 64
        %s439 = scalar_lea.vmem [#allocation7], %s438
        // Predicated region
        $region41: #{tpu_custom_call.1} parent=31 // pred_check
          %p440 = pneg %p123
        $region42: #{tpu_custom_call.1} parent=31 // pred_check_branch
          %442 = sbr.rel (%p440) target = $region44
        $region43: #{tpu_custom_call.1} parent=31 // pred_region
          %s443 = smul.u32 8, %s26
          %s445 = ssub.s32 1024, 1024
          %446 = vsyncadd %s436, %s445
          %s447 = smul.addr %s25, 8
          %s448 = sadd.s32 %s443, %s447
          %s449 = smul.addr %s448, 128
          %s450 = scalar_lea.hbm %s3, %s449
          %s451 = sshll.u32 %s439, 4
          %s452 = int_to_ptr.vmem [resolvable:$true] %s451
          %457 = dma.vmem_to_hbm [thread:$0]  %s452, 1024, %s450, %s436, 128, 128, 8
        $region44: #{tpu_custom_call.1} parent=31 // pred_fallthru
          _
      $region32: #{tpu_custom_call.1} parent=5 // pred_fallthru
        _
      %p458 = scmp.le.s32.totalorder 2, %s16
      // Predicated region
      $region45: #{tpu_custom_call.1} parent=5 // pred_check
        %p459 = pneg %p458
      $region46: #{tpu_custom_call.1} parent=5 // pred_check_branch
        %461 = sbr.rel (%p459) target = $region48
      $region47: #{tpu_custom_call.1} parent=5 // pred_region
        %s462 = ssub.s32 %s16, 2
        // Predicated region
        $region49: #{tpu_custom_call.1} parent=47 // pred_check
          %p463 = pneg %p129
        $region50: #{tpu_custom_call.1} parent=47 // pred_check_branch
          %465 = sbr.rel (%p463) target = $region52
        $region51: #{tpu_custom_call.1} parent=47 // pred_region
          %s466 = sand.u32 %s114, 1
          %s467 = scalar_lea.sflag [#allocation4], %s466
          %s468 = sand.u32 %s114, 1
          %s469 = smul.addr %s468, 64
          %s470 = scalar_lea.vmem [#allocation7], %s469
          %471 = dma.done %s467, 1024
        $region52: #{tpu_custom_call.1} parent=47 // pred_fallthru
          _
      $region48: #{tpu_custom_call.1} parent=5 // pred_fallthru
        _
    $region6: #{tpu_custom_call.1} parent=1 // loop_footer
      %s20 = sadd.s32 1, %s16
    $region7: #{tpu_custom_call.1} parent=1 // loop_footer_branch
      %15 = sbr.rel target = $region3
    $region8: #{tpu_custom_call.1} parent=1 // loop_exit
      _
    %472 = vsyncpa [#allocation3], 1
    %s473 = scalar_lea.sflag [#allocation3], 1
    %474 = vsyncpa %s473, 1
    %475 = vsyncpa [#allocation6], 1
    %476 = vsyncpa [#allocation4], 1
    %s477 = scalar_lea.sflag [#allocation4], 1
    %478 = vsyncpa %s477, 1

</llo_original>
